<compile_context>
chip_gen: v5e
topology: v5e:2x2
jax: 0.10.0
libtpu: 0.0.40
codegen_flags: <defaults>
</compile_context>

<pallas_src>
import functools

import jax
import jax.numpy as jnp
from jax.experimental import pallas as pl
from jax.experimental.pallas import tpu as pltpu


# ------------------------------ fused main path ------------------------------


def channel_gate_kernel(x_ref, w1t_ref, b1_ref, w2t_ref, b2_ref, o_ref):
    """One batch-block: pool -> shared MLP -> sigmoid -> scale, fused in VMEM.

    x_ref  : (Bt, C, HW) native dtype (full, un-padded spatial axis)
    w1t_ref: (C, Ch) f32   b1_ref: (1, Ch) f32
    w2t_ref: (Ch, C) f32   b2_ref: (1, C) f32
    o_ref  : (Bt, C, HW) native dtype
    """
    x = x_ref[...]
    bt, _, hw = x.shape

    # f32 spatial pooling: lane-axis reductions over the logical HW extent.
    avg_p = jnp.sum(x, axis=2, dtype=jnp.float32) * jnp.float32(1.0 / hw)   # (Bt, C)
    max_p = jnp.max(x, axis=2).astype(jnp.float32)                          # (Bt, C)

    # Sublane-stack the two pool vectors and run ONE 2-D matmul chain for both
    # branches (2 MXU pushes; no weight broadcast / batched dot_general).
    p = jnp.concatenate([avg_p, max_p], axis=0)                             # (2Bt, C)
    h = jnp.dot(p, w1t_ref[...], preferred_element_type=jnp.float32) + b1_ref[...]
    h = jnp.maximum(h, 0.0)                                                 # (2Bt, Ch)
    att = jnp.dot(h, w2t_ref[...], preferred_element_type=jnp.float32) + b2_ref[...]  # (2Bt, C)

    att_sum = att[:bt] + att[bt:]                                           # (Bt, C)
    scale = jax.nn.sigmoid(att_sum).astype(x.dtype)[:, :, None]             # (Bt, C, 1)

    # Dominant pass: native-dtype multiply, stored straight to the output block.
    o_ref[...] = x * scale


# -------------------------- HW-tiled fallback kernels -------------------------


def _pool_kernel(x_ref, sum_ref, max_ref, *, hw, hw_chunk):
    """Accumulate per-channel sum / max across HW chunks (reduction axis last)."""
    j = pl.program_id(1)

    @pl.when(j == 0)
    def _():
        sum_ref[...] = jnp.zeros_like(sum_ref)
        max_ref[...] = jnp.full_like(max_ref, -jnp.inf)

    x = x_ref[...]                                    # (1, C, hw_chunk)
    if hw % hw_chunk:
        # Only the final chunk is partial: mask the out-of-bounds lanes.
        lane = jax.lax.broadcasted_iota(jnp.int32, x.shape, 2) + j * hw_chunk
        valid = lane < hw
        x_sum = jnp.where(valid, x, jnp.zeros_like(x))
        x_max = jnp.where(valid, x, jnp.full_like(x, -jnp.inf))
    else:
        x_sum = x
        x_max = x

    sum_ref[...] += jnp.sum(x_sum, axis=2, keepdims=True, dtype=jnp.float32)
    max_ref[...] = jnp.maximum(
        max_ref[...], jnp.max(x_max, axis=2, keepdims=True).astype(jnp.float32))


def _scale_kernel(x_ref, s_ref, o_ref):
    o_ref[...] = x_ref[...] * s_ref[...]


# -------------------------------- tiling policy -------------------------------

_MIN_STEP_BYTES = 2 << 20   # keep each grid step >= ~2 MiB before adding more steps


def _vmem_budgets():
    """(per-block byte budget, vmem_limit_bytes) dispatched on the local chip."""
    try:
        vmem_bytes = pltpu.get_tpu_info().vmem_capacity_bytes
    except Exception:   # no TPU info available: assume the small-VMEM part (v7x)
        vmem_bytes = 64 << 20
    if vmem_bytes >= (96 << 20):
        # v5e / v6e: 128 MiB VMEM -> bigger blocks shrink pipeline prologue exposure.
        return 14 << 20, 64 << 20
    # v7x: 64 MiB physical / 32 MiB scoped. 2 in + 2 out buffers at 6 MiB = 24 MiB,
    # leaving headroom for the (tiny) in-kernel temporaries.
    return 6 << 20, 32 << 20


def _pick_block_batch(batch, bytes_per_batch, block_budget):
    """Pick a batch tile (divisor of `batch`) for the fused path.

    Preferences, in order:
      1. tile fits the per-block budget,
      2. an EVEN number of grid steps (v7x shards a 'parallel' axis over 2 TCs),
      3. more steps (saturating at 8, i.e. >=4 per TC) while each step >= 2 MiB,
      4. the largest tile.
    """
    divisors = [d for d in range(1, batch + 1) if batch % d == 0]
    fitting = [d for d in divisors if d * bytes_per_batch <= block_budget]
    if not fitting:
        return None                       # caller uses the HW-tiled fallback
    best, best_key = None, None
    for d in fitting:
        steps = batch // d
        step_bytes = d * bytes_per_batch
        even_steps = steps % 2 == 0
        depth = min(steps, 8) if step_bytes >= _MIN_STEP_BYTES else 0
        key = (even_steps, depth, step_bytes)
        if best_key is None or key > best_key:
            best, best_key = d, key
    return best


# --------------------------------- wrappers -----------------------------------


def _channel_gate_hw_tiled(x_flat, w1t, b1r, w2t, b2r, block_budget, vmem_limit):
    """Fallback when one batch element does not fit the block budget.

    Two HBM passes (unavoidable once a batch element exceeds VMEM):
      pass 1: HW-chunked pooling kernel accumulating per-channel sum / max,
      pass 2: HW-chunked scale-multiply kernel.
    The tiny (B, C) MLP + sigmoid runs as plain JAX in between.
    """
    B, C, HW = x_flat.shape
    dtype = x_flat.dtype
    itemsize = dtype.itemsize

    max_chunk = max(128, (block_budget // (C * itemsize)) // 128 * 128)
    hw_chunk = min(((HW + 127) // 128) * 128, max_chunk)
    n_hw = pl.cdiv(HW, hw_chunk)

    pool_fn = functools.partial(_pool_kernel, hw=HW, hw_chunk=hw_chunk)
    sum_p, max_p = pl.pallas_call(
        pool_fn,
        out_shape=(jax.ShapeDtypeStruct((B, C, 1), jnp.float32),
                   jax.ShapeDtypeStruct((B, C, 1), jnp.float32)),
        grid_spec=pltpu.PrefetchScalarGridSpec(
            num_scalar_prefetch=0,
            grid=(B, n_hw),
            in_specs=[pl.BlockSpec((1, C, hw_chunk), lambda b, j: (b, 0, j))],
            out_specs=(pl.BlockSpec((1, C, 1), lambda b, j: (b, 0, 0)),
                       pl.BlockSpec((1, C, 1), lambda b, j: (b, 0, 0))),
        ),
        compiler_params=pltpu.CompilerParams(
            dimension_semantics=("parallel", "arbitrary"),
            vmem_limit_bytes=vmem_limit,
        ),
    )(x_flat)

    avg_p = sum_p[:, :, 0] * jnp.float32(1.0 / HW)              # (B, C)
    p = jnp.concatenate([avg_p, max_p[:, :, 0]], axis=0)        # (2B, C)
    h = jnp.maximum(p @ w1t + b1r, 0.0)
    att = h @ w2t + b2r
    scale = jax.nn.sigmoid(att[:B] + att[B:]).astype(dtype)[:, :, None]   # (B, C, 1)

    return pl.pallas_call(
        _scale_kernel,
        out_shape=jax.ShapeDtypeStruct((B, C, HW), dtype),
        grid_spec=pltpu.PrefetchScalarGridSpec(
            num_scalar_prefetch=0,
            grid=(B, n_hw),
            in_specs=[pl.BlockSpec((1, C, hw_chunk), lambda b, j: (b, 0, j)),
                      pl.BlockSpec((1, C, 1), lambda b, j: (b, 0, 0))],
            out_specs=pl.BlockSpec((1, C, hw_chunk), lambda b, j: (b, 0, j)),
        ),
        compiler_params=pltpu.CompilerParams(
            dimension_semantics=("parallel", "parallel"),
            vmem_limit_bytes=vmem_limit,
        ),
    )(x_flat, scale)


def channel_gate(x_nchw, w1, b1, w2, b2, *, block_budget_bytes=None):
    """ChannelGate forward.

    x_nchw: (B, C, H, W) floating point.
    Weights in PyTorch Linear layout: w1 (Ch, C), b1 (Ch,), w2 (C, Ch), b2 (C,).
    """
    if not jnp.issubdtype(x_nchw.dtype, jnp.floating):
        raise ValueError(f"channel_gate expects a floating-point input, got {x_nchw.dtype}")
    B, C, H, W = x_nchw.shape
    Ch = w1.shape[0]
    HW = H * W

    # (B, C, HW) is a free reshape; NO wrapper-side padding / slicing (each of
    # those would be an extra HBM read+write pass over the activation).
    x_flat = x_nchw.reshape(B, C, HW)

    # Weights pre-cast / pre-transposed once (2D-dot-friendly form).
    w1t = w1.astype(jnp.float32).T                # (C, Ch)
    w2t = w2.astype(jnp.float32).T                # (Ch, C)
    b1r = b1.astype(jnp.float32).reshape(1, Ch)
    b2r = b2.astype(jnp.float32).reshape(1, C)

    block_budget, vmem_limit = _vmem_budgets()
    if block_budget_bytes is not None:
        block_budget = block_budget_bytes

    bytes_per_batch = C * HW * x_flat.dtype.itemsize
    if bytes_per_batch > block_budget:
        out_flat = _channel_gate_hw_tiled(x_flat, w1t, b1r, w2t, b2r,
                                          block_budget, vmem_limit)
        return out_flat.reshape(B, C, H, W)

    bt = _pick_block_batch(B, bytes_per_batch, block_budget)
    out_flat = pl.pallas_call(
        channel_gate_kernel,
        out_shape=jax.ShapeDtypeStruct((B, C, HW), x_flat.dtype),
        grid_spec=pltpu.PrefetchScalarGridSpec(
            num_scalar_prefetch=0,
            grid=(B // bt,),
            in_specs=[
                pl.BlockSpec((bt, C, HW), lambda b: (b, 0, 0)),
                pl.BlockSpec((C, Ch), lambda b: (0, 0)),
                pl.BlockSpec((1, Ch), lambda b: (0, 0)),
                pl.BlockSpec((Ch, C), lambda b: (0, 0)),
                pl.BlockSpec((1, C), lambda b: (0, 0)),
            ],
            out_specs=pl.BlockSpec((bt, C, HW), lambda b: (b, 0, 0)),
        ),
        compiler_params=pltpu.CompilerParams(
            dimension_semantics=("parallel",),
            vmem_limit_bytes=vmem_limit,
        ),
    )(x_flat, w1t, b1r, w2t, b2r)
    return out_flat.reshape(B, C, H, W)


def channel_gate_reference(x_nchw, w1, b1, w2, b2):
    """Pure-JAX reference matching the PyTorch forward (pool_types=['avg','max'])."""
    B, C, H, W = x_nchw.shape
    xf = x_nchw.astype(jnp.float32).reshape(B, C, H * W)
    avg_pool = jnp.mean(xf, axis=2)                          # (B, C)
    max_pool = jnp.max(xf, axis=2)                           # (B, C)

    def mlp(p):  # p: (B, C); PyTorch Linear: p @ W.T + b
        h = jnp.maximum(p @ w1.T + b1, 0.0)
        return h @ w2.T + b2

    att = mlp(avg_pool) + mlp(max_pool)                      # (B, C)
    scale = jax.nn.sigmoid(att)[:, :, None, None]            # (B, C, 1, 1)
    return (x_nchw.astype(jnp.float32) * scale).astype(x_nchw.dtype)


if __name__ == "__main__":
    # gate_channels=32, reduction_ratio=4 -> hidden=8
    B, C, H, W = 2, 32, 16, 16
    reduction_ratio = 4
    Ch = C // reduction_ratio

    key = jax.random.PRNGKey(0)
    kx, kx2, kw1, kb1, kw2, kb2 = jax.random.split(key, 6)

    x = jax.random.normal(kx, (B, C, H, W), dtype=jnp.float32)

    # Deterministic Linear params, PyTorch convention: W (out, in), b (out,)
    bound1 = 1.0 / (C ** 0.5)
    w1 = jax.random.uniform(kw1, (Ch, C), minval=-bound1, maxval=bound1, dtype=jnp.float32)
    b1 = jax.random.uniform(kb1, (Ch,), minval=-bound1, maxval=bound1, dtype=jnp.float32)
    bound2 = 1.0 / (Ch ** 0.5)
    w2 = jax.random.uniform(kw2, (C, Ch), minval=-bound2, maxval=bound2, dtype=jnp.float32)
    b2 = jax.random.uniform(kb2, (C,), minval=-bound2, maxval=bound2, dtype=jnp.float32)

    # 1) f32, lane-aligned HW (fused main path).
    out = jax.block_until_ready(channel_gate(x, w1, b1, w2, b2))
    ref = channel_gate_reference(x, w1, b1, w2, b2)
    assert out.shape == (B, C, H, W)
    assert jnp.allclose(out, ref, atol=1e-5, rtol=1e-5), "f32 mismatch vs reference"

    # 2) f32, non-128-aligned HW (main path: full-HW blocks, masked edge stores,
    #    no wrapper-side HBM padding / slicing).
    x2 = jax.random.normal(kx2, (B, C, 20, 20), dtype=jnp.float32)
    out2 = jax.block_until_ready(channel_gate(x2, w1, b1, w2, b2))
    ref2 = channel_gate_reference(x2, w1, b1, w2, b2)
    assert jnp.allclose(out2, ref2, atol=1e-5, rtol=1e-5), "non-aligned HW mismatch"

    # 3) bf16 activations (native-dtype scale multiply) with a bf16-appropriate tolerance.
    xb = x.astype(jnp.bfloat16)
    outb = jax.block_until_ready(channel_gate(xb, w1, b1, w2, b2))
    refb = channel_gate_reference(xb, w1, b1, w2, b2)
    assert jnp.allclose(outb.astype(jnp.float32), refb.astype(jnp.float32),
                        atol=5e-2, rtol=5e-2), "bf16 mismatch vs reference"

    # 4) HW-tiled fallback path (forced via a tiny per-block budget), including a
    #    partial (masked) trailing spatial chunk.
    out3 = jax.block_until_ready(
        channel_gate(x2, w1, b1, w2, b2, block_budget_bytes=32 * 1024))
    assert jnp.allclose(out3, ref2, atol=1e-5, rtol=1e-5), "HW-tiled fallback mismatch"

    print("KERNEL_OK")
</pallas_src>

<mosaic_0001>
module attributes {stable_mosaic.version = 11 : i64} {
  func.func @channel_gate_kernel(%arg0: i32, %arg1: memref<1x32x256xf32, #tpu.memory_space<vmem>>, %arg2: memref<32x8xf32, #tpu.memory_space<vmem>>, %arg3: memref<1x8xf32, #tpu.memory_space<vmem>>, %arg4: memref<8x32xf32, #tpu.memory_space<vmem>>, %arg5: memref<1x32xf32, #tpu.memory_space<vmem>>, %arg6: memref<1x32x256xf32, #tpu.memory_space<vmem>>) attributes {dimension_semantics = [#tpu.dimension_semantics<parallel>], iteration_bounds = array<i64: 2>, scalar_prefetch = 0 : i64, scratch_operands = 0 : i64, tpu.core_type = #tpu.core_type<tc>, window_params = [{transform_indices = @transform_0, window_bounds = array<i64: 1, 32, 256>}, {pipeline_mode = #tpu.pipeline_mode<synchronous>, transform_indices = @transform_1, window_bounds = array<i64: 32, 8>}, {pipeline_mode = #tpu.pipeline_mode<synchronous>, transform_indices = @transform_2, window_bounds = array<i64: 1, 8>}, {pipeline_mode = #tpu.pipeline_mode<synchronous>, transform_indices = @transform_3, window_bounds = array<i64: 8, 32>}, {pipeline_mode = #tpu.pipeline_mode<synchronous>, transform_indices = @transform_4, window_bounds = array<i64: 1, 32>}, {transform_indices = @transform_5, window_bounds = array<i64: 1, 32, 256>}]} {
    %c0 = arith.constant 0 : index
    %c0_0 = arith.constant 0 : index
    %c0_1 = arith.constant 0 : index
    %0 = vector.load %arg1[%c0, %c0_0, %c0_1] : memref<1x32x256xf32, #tpu.memory_space<vmem>>, vector<1x32x256xf32>
    %cst = arith.constant dense<0.000000e+00> : vector<1x32xf32>
    %1 = vector.multi_reduction <add>, %0, %cst [2] : vector<1x32x256xf32> to vector<1x32xf32>
    %cst_2 = arith.constant 3.906250e-03 : f32
    %2 = vector.broadcast %cst_2 : f32 to vector<1x32xf32>
    %3 = arith.mulf %1, %2 : vector<1x32xf32>
    %cst_3 = arith.constant dense<0xFF800000> : vector<1x32xf32>
    %4 = vector.multi_reduction <maximumf>, %0, %cst_3 [2] : vector<1x32x256xf32> to vector<1x32xf32>
    %5 = tpu.concatenate %3, %4 in 0 : vector<1x32xf32>, vector<1x32xf32> -> vector<2x32xf32>
    %c0_4 = arith.constant 0 : index
    %c0_5 = arith.constant 0 : index
    %6 = vector.load %arg2[%c0_4, %c0_5] : memref<32x8xf32, #tpu.memory_space<vmem>>, vector<32x8xf32>
    %cst_6 = arith.constant dense<0.000000e+00> : vector<2x8xf32>
    %7 = tpu.matmul %5, %6, %cst_6 {dimension_numbers = #tpu.dot_dimension_numbers<[1], [0], [0], [1], [0, 0, 1, 1], [], []>} : vector<2x32xf32>, vector<32x8xf32>, vector<2x8xf32> -> vector<2x8xf32>
    %c0_7 = arith.constant 0 : index
    %c0_8 = arith.constant 0 : index
    %8 = vector.load %arg3[%c0_7, %c0_8] : memref<1x8xf32, #tpu.memory_space<vmem>>, vector<1x8xf32>
    %9 = vector.broadcast %8 : vector<1x8xf32> to vector<2x8xf32>
    %10 = arith.addf %7, %9 : vector<2x8xf32>
    %cst_9 = arith.constant 0.000000e+00 : f32
    %11 = vector.broadcast %cst_9 : f32 to vector<2x8xf32>
    %12 = arith.maximumf %10, %11 : vector<2x8xf32>
    %c0_10 = arith.constant 0 : index
    %c0_11 = arith.constant 0 : index
    %13 = vector.load %arg4[%c0_10, %c0_11] : memref<8x32xf32, #tpu.memory_space<vmem>>, vector<8x32xf32>
    %cst_12 = arith.constant dense<0.000000e+00> : vector<2x32xf32>
    %14 = tpu.matmul %12, %13, %cst_12 {dimension_numbers = #tpu.dot_dimension_numbers<[1], [0], [0], [1], [0, 0, 1, 1], [], []>} : vector<2x8xf32>, vector<8x32xf32>, vector<2x32xf32> -> vector<2x32xf32>
    %c0_13 = arith.constant 0 : index
    %c0_14 = arith.constant 0 : index
    %15 = vector.load %arg5[%c0_13, %c0_14] : memref<1x32xf32, #tpu.memory_space<vmem>>, vector<1x32xf32>
    %16 = vector.broadcast %15 : vector<1x32xf32> to vector<2x32xf32>
    %17 = arith.addf %14, %16 : vector<2x32xf32>
    %18 = vector.extract_strided_slice %17 {offsets = [0, 0], sizes = [1, 32], strides = [1, 1]} : vector<2x32xf32> to vector<1x32xf32>
    %19 = vector.extract_strided_slice %17 {offsets = [1, 0], sizes = [1, 32], strides = [1, 1]} : vector<2x32xf32> to vector<1x32xf32>
    %20 = arith.addf %18, %19 : vector<1x32xf32>
    %21 = arith.negf %20 : vector<1x32xf32>
    %22 = math.exp %21 : vector<1x32xf32>
    %cst_15 = arith.constant 1.000000e+00 : f32
    %23 = vector.broadcast %cst_15 : f32 to vector<1x32xf32>
    %24 = arith.addf %23, %22 : vector<1x32xf32>
    %25 = arith.divf %23, %24 : vector<1x32xf32>
    %26 = vector.shape_cast %25 : vector<1x32xf32> to vector<1x32x1xf32>
    %27 = vector.broadcast %26 : vector<1x32x1xf32> to vector<1x32x256xf32>
    %28 = arith.mulf %0, %27 : vector<1x32x256xf32>
    %c0_16 = arith.constant 0 : index
    %c0_17 = arith.constant 0 : index
    %c0_18 = arith.constant 0 : index
    %29 = vector.load %arg6[%c0_16, %c0_17, %c0_18] : memref<1x32x256xf32, #tpu.memory_space<vmem>>, vector<1x32x256xf32>
    tpu.vector_store %arg6[%c0_16, %c0_17, %c0_18], %28 {strides = array<i32>} : memref<1x32x256xf32, #tpu.memory_space<vmem>>, vector<1x32x256xf32>,
    return
  }
  func.func @transform_0(%arg0: i32) -> (i32, i32, i32) {
    %c0_i32 = arith.constant 0 : i32
    %c0_i32_0 = arith.constant 0 : i32
    %c0_i32_1 = arith.constant 0 : i32
    return %arg0, %c0_i32, %c0_i32_0 : i32, i32, i32
  }
  func.func @transform_1(%arg0: i32) -> (i32, i32) {
    %c0_i32 = arith.constant 0 : i32
    %c0_i32_0 = arith.constant 0 : i32
    %c0_i32_1 = arith.constant 0 : i32
    return %c0_i32, %c0_i32_0 : i32, i32
  }
  func.func @transform_2(%arg0: i32) -> (i32, i32) {
    %c0_i32 = arith.constant 0 : i32
    %c0_i32_0 = arith.constant 0 : i32
    %c0_i32_1 = arith.constant 0 : i32
    return %c0_i32, %c0_i32_0 : i32, i32
  }
  func.func @transform_3(%arg0: i32) -> (i32, i32) {
    %c0_i32 = arith.constant 0 : i32
    %c0_i32_0 = arith.constant 0 : i32
    %c0_i32_1 = arith.constant 0 : i32
    return %c0_i32, %c0_i32_0 : i32, i32
  }
  func.func @transform_4(%arg0: i32) -> (i32, i32) {
    %c0_i32 = arith.constant 0 : i32
    %c0_i32_0 = arith.constant 0 : i32
    %c0_i32_1 = arith.constant 0 : i32
    return %c0_i32, %c0_i32_0 : i32, i32
  }
  func.func @transform_5(%arg0: i32) -> (i32, i32, i32) {
    %c0_i32 = arith.constant 0 : i32
    %c0_i32_0 = arith.constant 0 : i32
    %c0_i32_1 = arith.constant 0 : i32
    return %arg0, %c0_i32, %c0_i32_0 : i32, i32, i32
  }
}

</mosaic_0001>

<llo_original>
// kernel: tpu_custom_call.1
$region0: #{tpu_custom_call.1}
  #allocation0 [shape = 'u32[]', space=smem, size = 0x4, offset = 0x4, fixed_abs, tag = 'smem constant byte address 0x4 - core index']
  #allocation1 [shape = 'u32[72,128]{1,0:T(1,128)}', space=vmem, size = 0x9000, scoped, tag = 'internal scratch']
  %s0 = inlined_call_operand.hbm [shape: f32[2,32,256], index: 0, kind: input, shape index: {}]
  %s1 = inlined_call_operand.vmem [shape: f32[32,8], index: 1, kind: input, shape index: {}]
  %s2 = inlined_call_operand.vmem [shape: f32[1,8], index: 2, kind: input, shape index: {}]
  %s3 = inlined_call_operand.vmem [shape: f32[8,32], index: 3, kind: input, shape index: {}]
  %s4 = inlined_call_operand.vmem [shape: f32[1,32], index: 4, kind: input, shape index: {}]
  %s5 = inlined_call_operand.hbm [shape: f32[2,32,256], index: 5, kind: output, shape index: {}]
  %s6 = sld [smem:[#allocation0]]
  $region57: #{tpu_custom_call.1} parent=0
    _
  %s8 = ssub.s32 1, %s6
  %s9 = scalar_select 0, %s8, %s6
  $region1: #{tpu_custom_call.1} parent=0
    #allocation2 [shape = 'u8[65536]{0}', space=vmem, size = 0x10000, scoped, tag = 'input window, operand 0']
    #allocation3 [shape = 's32[2]{0}', space=sflag, size = 0x8, scoped, tag = 'scoped memory for tpu_custom_call.1']
    #allocation4 [shape = 's32[2]{0}', space=sflag, size = 0x8, scoped, tag = 'scoped memory for tpu_custom_call.1']
    #allocation5 [shape = 'u8[65536]{0}', space=vmem, size = 0x10000, scoped, tag = 'output window, operand 0']
    %10 = vsyncpa [#allocation3], 0
    %s11 = scalar_lea.sflag [#allocation3], 1
    %12 = vsyncpa %s11, 0
    %13 = vsyncpa [#allocation4], 0
    %s14 = scalar_lea.sflag [#allocation4], 1
    %15 = vsyncpa %s14, 0
    loop: start=0, step=1, limit=4
    $region2: #{tpu_custom_call.1} parent=1 // loop_pre_header
      _
    $region3: #{tpu_custom_call.1} parent=1 // loop_header
      %s17 = sphi 0, %s21
      %p18 = scmp.ge.s32.totalorder %s17, 4
      %s27 = sphi 0, %s29
      %s30 = sphi 0, %s27
      %s31 = sphi 0, %s30
      %s47 = sphi 0, %s31
      %s51 = sphi 0, %s51
      %s53 = sphi 0, %s51
      %s54 = sphi 0, %s53
      %s68 = sphi 0, %s54
      %s72 = sphi 0, %s72
      %s74 = sphi 0, %s72
      %s75 = sphi 0, %s74
      %s89 = sphi 0, %s75
      %s93 = sphi 0, %s93
      %s95 = sphi 0, %s93
      %s96 = sphi 0, %s95
      %s110 = sphi 0, %s96
      %s114 = sphi 0, %s114
      %s116 = sphi 0, %s114
      %s117 = sphi 0, %s116
      %s131 = sphi 0, %s117
      %s137 = sphi 0, %s139
      %s140 = sphi 0, %s137
      %s141 = sphi 0, %s140
      %s157 = sphi 0, %s141
    $region4: #{tpu_custom_call.1} parent=1 // loop_header_branch
      %20 = sbr.rel (%p18) target = $region8
    $region5: #{tpu_custom_call.1} parent=1 // loop_body
      %s22 = ssub.s32 %s17, 1
      %s23 = ssub.s32 %s17, 2
      %s24 = sadd.s32 %s17, 1
      %s25 = ssub.s32 %s17, %s24
      %p26 = scmp.eq.s32.totalorder %s25, 0
      %s28 = sadd.s32 %s27, 1
      %s29 = scalar_select %p26, %s27, %s28
      %p32 = pneg %p26
      %p33 = scmp.eq.s32.totalorder %s17, 1
      %p34 = por %p32, %p33
      %p35 = scmp.ne.s32.totalorder %s27, %s30
      %p36 = scmp.eq.s32.totalorder %s17, 0
      %p37 = por %p35, %p36
      %p38 = scmp.ne.s32.totalorder %s27, %s30
      %p39 = scmp.eq.s32.totalorder %s22, 1
      %p40 = por %p38, %p39
      %p41 = scmp.ne.s32.totalorder %s30, %s31
      %p42 = scmp.eq.s32.totalorder %s22, 0
      %p43 = por %p41, %p42
      %p44 = scmp.ne.s32.totalorder %s30, %s31
      %p45 = scmp.eq.s32.totalorder %s23, 1
      %p46 = por %p44, %p45
      %p48 = scmp.ne.s32.totalorder %s31, %s47
      %p49 = scmp.eq.s32.totalorder %s23, 0
      %p50 = por %p48, %p49
      %s52 = sadd.s32 %s51, 1
      %p55 = scmp.eq.s32.totalorder %s17, 1
      %p56 = scmp.ne.s32.totalorder %s51, %s53
      %p57 = scmp.eq.s32.totalorder %s17, 0
      %p58 = por %p56, %p57
      %p59 = scmp.ne.s32.totalorder %s51, %s53
      %p60 = scmp.eq.s32.totalorder %s22, 1
      %p61 = por %p59, %p60
      %p62 = scmp.ne.s32.totalorder %s53, %s54
      %p63 = scmp.eq.s32.totalorder %s22, 0
      %p64 = por %p62, %p63
      %p65 = scmp.ne.s32.totalorder %s53, %s54
      %p66 = scmp.eq.s32.totalorder %s23, 1
      %p67 = por %p65, %p66
      %p69 = scmp.ne.s32.totalorder %s54, %s68
      %p70 = scmp.eq.s32.totalorder %s23, 0
      %p71 = por %p69, %p70
      %s73 = sadd.s32 %s72, 1
      %p76 = scmp.eq.s32.totalorder %s17, 1
      %p77 = scmp.ne.s32.totalorder %s72, %s74
      %p78 = scmp.eq.s32.totalorder %s17, 0
      %p79 = por %p77, %p78
      %p80 = scmp.ne.s32.totalorder %s72, %s74
      %p81 = scmp.eq.s32.totalorder %s22, 1
      %p82 = por %p80, %p81
      %p83 = scmp.ne.s32.totalorder %s74, %s75
      %p84 = scmp.eq.s32.totalorder %s22, 0
      %p85 = por %p83, %p84
      %p86 = scmp.ne.s32.totalorder %s74, %s75
      %p87 = scmp.eq.s32.totalorder %s23, 1
      %p88 = por %p86, %p87
      %p90 = scmp.ne.s32.totalorder %s75, %s89
      %p91 = scmp.eq.s32.totalorder %s23, 0
      %p92 = por %p90, %p91
      %s94 = sadd.s32 %s93, 1
      %p97 = scmp.eq.s32.totalorder %s17, 1
      %p98 = scmp.ne.s32.totalorder %s93, %s95
      %p99 = scmp.eq.s32.totalorder %s17, 0
      %p100 = por %p98, %p99
      %p101 = scmp.ne.s32.totalorder %s93, %s95
      %p102 = scmp.eq.s32.totalorder %s22, 1
      %p103 = por %p101, %p102
      %p104 = scmp.ne.s32.totalorder %s95, %s96
      %p105 = scmp.eq.s32.totalorder %s22, 0
      %p106 = por %p104, %p105
      %p107 = scmp.ne.s32.totalorder %s95, %s96
      %p108 = scmp.eq.s32.totalorder %s23, 1
      %p109 = por %p107, %p108
      %p111 = scmp.ne.s32.totalorder %s96, %s110
      %p112 = scmp.eq.s32.totalorder %s23, 0
      %p113 = por %p111, %p112
      %s115 = sadd.s32 %s114, 1
      %p118 = scmp.eq.s32.totalorder %s17, 1
      %p119 = scmp.ne.s32.totalorder %s114, %s116
      %p120 = scmp.eq.s32.totalorder %s17, 0
      %p121 = por %p119, %p120
      %p122 = scmp.ne.s32.totalorder %s114, %s116
      %p123 = scmp.eq.s32.totalorder %s22, 1
      %p124 = por %p122, %p123
      %p125 = scmp.ne.s32.totalorder %s116, %s117
      %p126 = scmp.eq.s32.totalorder %s22, 0
      %p127 = por %p125, %p126
      %p128 = scmp.ne.s32.totalorder %s116, %s117
      %p129 = scmp.eq.s32.totalorder %s23, 1
      %p130 = por %p128, %p129
      %p132 = scmp.ne.s32.totalorder %s117, %s131
      %p133 = scmp.eq.s32.totalorder %s23, 0
      %p134 = por %p132, %p133
      %s135 = ssub.s32 %s17, %s24
      %p136 = scmp.eq.s32.totalorder %s135, 0
      %s138 = sadd.s32 %s137, 1
      %s139 = scalar_select %p136, %s137, %s138
      %p142 = pneg %p136
      %p143 = scmp.eq.s32.totalorder %s17, 1
      %p144 = por %p142, %p143
      %p145 = scmp.ne.s32.totalorder %s137, %s140
      %p146 = scmp.eq.s32.totalorder %s17, 0
      %p147 = por %p145, %p146
      %p148 = scmp.ne.s32.totalorder %s137, %s140
      %p149 = scmp.eq.s32.totalorder %s22, 1
      %p150 = por %p148, %p149
      %p151 = scmp.ne.s32.totalorder %s140, %s141
      %p152 = scmp.eq.s32.totalorder %s22, 0
      %p153 = por %p151, %p152
      %p154 = scmp.ne.s32.totalorder %s140, %s141
      %p155 = scmp.eq.s32.totalorder %s23, 1
      %p156 = por %p154, %p155
      %p158 = scmp.ne.s32.totalorder %s141, %s157
      %p159 = scmp.eq.s32.totalorder %s23, 0
      %p160 = por %p158, %p159
      %p161 = scmp.le.s32.totalorder 1, %s17
      %p162 = scmp.lt.s32.totalorder %s17, 3
      %p163 = pnand %p161, %p162
      %p164 = pneg %p163
      // Predicated region
      $region9: #{tpu_custom_call.1} parent=5 // pred_check
        _
      $region10: #{tpu_custom_call.1} parent=5 // pred_check_branch
        %166 = sbr.rel (%p163) target = $region12
      $region11: #{tpu_custom_call.1} parent=5 // pred_region
        %s167 = ssub.s32 %s17, 1
        // Predicated region
        $region13: #{tpu_custom_call.1} parent=11 // pred_check
          %p168 = pneg %p64
        $region14: #{tpu_custom_call.1} parent=11 // pred_check_branch
          %170 = sbr.rel (%p168) target = $region16
        $region15: #{tpu_custom_call.1} parent=11 // pred_region
          _
        $region16: #{tpu_custom_call.1} parent=11 // pred_fallthru
          _
        // Predicated region
        $region17: #{tpu_custom_call.1} parent=11 // pred_check
          %p171 = pneg %p85
        $region18: #{tpu_custom_call.1} parent=11 // pred_check_branch
          %173 = sbr.rel (%p171) target = $region20
        $region19: #{tpu_custom_call.1} parent=11 // pred_region
          _
        $region20: #{tpu_custom_call.1} parent=11 // pred_fallthru
          _
        // Predicated region
        $region21: #{tpu_custom_call.1} parent=11 // pred_check
          %p174 = pneg %p106
        $region22: #{tpu_custom_call.1} parent=11 // pred_check_branch
          %176 = sbr.rel (%p174) target = $region24
        $region23: #{tpu_custom_call.1} parent=11 // pred_region
          _
        $region24: #{tpu_custom_call.1} parent=11 // pred_fallthru
          _
        // Predicated region
        $region25: #{tpu_custom_call.1} parent=11 // pred_check
          %p177 = pneg %p127
        $region26: #{tpu_custom_call.1} parent=11 // pred_check_branch
          %179 = sbr.rel (%p177) target = $region28
        $region27: #{tpu_custom_call.1} parent=11 // pred_region
          _
        $region28: #{tpu_custom_call.1} parent=11 // pred_fallthru
          _
      $region12: #{tpu_custom_call.1} parent=5 // pred_fallthru
        _
      %p180 = scmp.lt.s32.totalorder %s17, 2
      // Predicated region
      $region29: #{tpu_custom_call.1} parent=5 // pred_check
        %p181 = pneg %p180
      $region30: #{tpu_custom_call.1} parent=5 // pred_check_branch
        %183 = sbr.rel (%p181) target = $region32
      $region31: #{tpu_custom_call.1} parent=5 // pred_region
        // Predicated region
        $region33: #{tpu_custom_call.1} parent=31 // pred_check
          %p184 = pneg %p37
        $region34: #{tpu_custom_call.1} parent=31 // pred_check_branch
          %186 = sbr.rel (%p184) target = $region36
        $region35: #{tpu_custom_call.1} parent=31 // pred_region
          %s187 = sand.u32 %s27, 1
          %s188 = scalar_lea.sflag [#allocation3], %s187
          %s189 = sand.u32 %s27, 1
          %s190 = smul.addr %s189, 64
          %s191 = scalar_lea.vmem [#allocation2], %s190
          %193 = vsyncadd %s188, 0
          %s194 = smul.addr %s17, 8
          %s195 = smul.addr %s194, 8
          %s196 = scalar_lea.hbm %s0, %s195
          %s197 = sshll.u32 %s196, 4
          %s198 = int_to_ptr.hbm [resolvable:$true] %s197
          %s199 = sshll.u32 %s191, 4
          %s200 = int_to_ptr.vmem [resolvable:$true] %s199
          %205 = dma.hbm_to_vmem [thread:$0]  %s198, 1024, %s200, %s188, 256, 256, 16
        $region36: #{tpu_custom_call.1} parent=31 // pred_fallthru
          _
      $region32: #{tpu_custom_call.1} parent=5 // pred_fallthru
        _
      %p206 = scmp.le.s32.totalorder 1, %s17
      %p207 = scmp.lt.s32.totalorder %s17, 3
      %p208 = pnand %p206, %p207
      %p209 = pneg %p208
      // Predicated region
      $region37: #{tpu_custom_call.1} parent=5 // pred_check
        _
      $region38: #{tpu_custom_call.1} parent=5 // pred_check_branch
        %211 = sbr.rel (%p208) target = $region40
      $region39: #{tpu_custom_call.1} parent=5 // pred_region
        %s212 = ssub.s32 %s17, 1
        %s213 = sand.u32 %s30, 1
        %s214 = scalar_lea.sflag [#allocation3], %s213
        %s215 = sand.u32 %s30, 1
        %s216 = smul.addr %s215, 64
        %s217 = scalar_lea.vmem [#allocation2], %s216
        // Predicated region
        $region41: #{tpu_custom_call.1} parent=39 // pred_check
          %p218 = pneg %p43
        $region42: #{tpu_custom_call.1} parent=39 // pred_check_branch
          %220 = sbr.rel (%p218) target = $region44
        $region43: #{tpu_custom_call.1} parent=39 // pred_region
          %222 = dma.done %s214, 1024
        $region44: #{tpu_custom_call.1} parent=39 // pred_fallthru
          _
        %s223 = sand.u32 %s30, 1
        %s224 = scalar_lea.sflag [#allocation3], %s223
        %s225 = sand.u32 %s30, 1
        %s226 = smul.addr %s225, 64
        %s227 = scalar_lea.vmem [#allocation2], %s226
        %p228 = pneg %p43
        %p229 = pneg %p40
        %p230 = pneg %p64
        %p231 = pneg %p61
        %p232 = pneg %p85
        %p233 = pneg %p82
        %p234 = pneg %p106
        %p235 = pneg %p103
        %p236 = pneg %p127
        %p237 = pneg %p124
        %p238 = pneg %p153
        %p239 = pneg %p150
        %s240 = sand.u32 %s140, 1
        %s241 = scalar_lea.sflag [#allocation4], %s240
        %s242 = sand.u32 %s140, 1
        %s243 = smul.addr %s242, 64
        %s244 = scalar_lea.vmem [#allocation5], %s243
        %v245 = vld [vmem:[%s217] sm:$0xff]
        %v246 = vld [vmem:[%s217 + $0x8] sm:$0xff]
        %v247 = vld [vmem:[%s217 + $0x10] sm:$0xff]
        %v248 = vld [vmem:[%s217 + $0x18] sm:$0xff]
        %v249 = vld [vmem:[%s217 + $0x20] sm:$0xff]
        %v250 = vld [vmem:[%s217 + $0x28] sm:$0xff]
        %v251 = vld [vmem:[%s217 + $0x30] sm:$0xff]
        %v252 = vld [vmem:[%s217 + $0x38] sm:$0xff]
        %v253 = vadd.f32 %v245, %v246
        %254 = vadd.xlane.f32.xlu0 %v253
        %v255 = vpop.xlane.xlu0 %254
        %v256 = vadd.f32 %v247, %v248
        %257 = vadd.xlane.f32.xlu0 %v256
        %v258 = vpop.xlane.xlu0 %257
        %v259 = vadd.f32 %v249, %v250
        %260 = vadd.xlane.f32.xlu0 %v259
        %v261 = vpop.xlane.xlu0 %260
        %v262 = vadd.f32 %v251, %v252
        %263 = vadd.xlane.f32.xlu0 %v262
        %v264 = vpop.xlane.xlu0 %263
        %v265 = vmul.f32 %v255, 0.00390625
        %v266 = vmul.f32 %v258, 0.00390625
        %v267 = vmul.f32 %v261, 0.00390625
        %v268 = vmul.f32 %v264, 0.00390625
        %v269 = vmax.f32 %v245, %v246
        %270 = vmax.xlane.f32.xlu0 %v269
        %v271 = vpop.xlane.xlu0 %270
        %v272 = vmax.f32 %v247, %v248
        %273 = vmax.xlane.f32.xlu0 %v272
        %v274 = vpop.xlane.xlu0 %273
        %v275 = vmax.f32 %v249, %v250
        %276 = vmax.xlane.f32.xlu0 %v275
        %v277 = vpop.xlane.xlu0 %276
        %v278 = vmax.f32 %v251, %v252
        %279 = vmax.xlane.f32.xlu0 %v278
        %v280 = vpop.xlane.xlu0 %279
        %v285 = vlaneseq
        %v286 = vand.u32 %v285, 127
        %v287 = vperm.slane %v265, %v286
        %v288 = vadd.s32 %v286, 4294967288
        %v289 = vperm.slane %v266, %v288
        %vm290 = vcmask 130112
        %v291 = vsel %vm290, %v289, %v287
        %v292 = vadd.s32 %v286, 4294967280
        %v293 = vperm.slane %v267, %v292
        %vm294 = vcmask 195712
        %v295 = vsel %vm294, %v293, %v291
        %v296 = vadd.s32 %v286, 4294967272
        %v297 = vperm.slane %v268, %v296
        %vm298 = vcmask 261312
        %v299 = vsel %vm298, %v297, %v295
        %v305 = vperm.slane %v271, %v286
        %v306 = vperm.slane %v274, %v288
        %v307 = vsel %vm290, %v306, %v305
        %v308 = vperm.slane %v277, %v292
        %v309 = vsel %vm294, %v308, %v307
        %v310 = vperm.slane %v280, %v296
        %v311 = vsel %vm298, %v310, %v309
        %vm313 = vcmask 1040384
        %v314 = vsel %vm313, %v299, %v311
        %v315 = vld [vmem:[%s1] sm:$0xff]
        %v316 = vld [vmem:[%s1 + $0x8] sm:$0xff]
        %v317 = vld [vmem:[%s1 + $0x10] sm:$0xff]
        %v318 = vld [vmem:[%s1 + $0x18] sm:$0xff]
        %v319 = vld [vmem:[%s2] sm:$0x1]
        %v321 = vperm.slane %v319, 0
        %vm323 = vcmask 261120
        %v325 = vsel %vm323, %v314, 0
        %327 = vmatpush.msra.mxu0 0.0
        %328 = vmatpush.msra.mxu0 0.0
        %329 = vmatpush.msra.mxu0 0.0
        %330 = vmatpush.msra.mxu0 0.0
        %331 = vmatpush.msra.mxu0 0.0
        %332 = vmatpush.msra.mxu0 0.0
        %333 = vmatpush.msra.mxu0 0.0
        %334 = vmatpush.msra.mxu0 0.0
        %335 = vmatpush.msra.mxu0 0.0
        %336 = vmatpush.msra.mxu0 0.0
        %337 = vmatpush.msra.mxu0 0.0
        %338 = vmatpush.msra.mxu0 0.0
        %339 = vmatpush.msra.mxu0 %v318
        %340 = vmatpush.msra.mxu0 %v317
        %341 = vmatpush.msra.mxu0 %v316
        %342 = vmatpush.msra.mxu0 %v315
        %343 = vmatmul.f32.gmra.mxu0 %v325
        %v344 = vpop.f32.mrf.mxu0
        %v345 = vadd.f32 %v321, %v344
        %346 = vdwg.mxu0
        %v347 = vmax.f32 %v345, 0.0
        %v348 = vld [vmem:[%s3] sm:$0xff]
        %v349 = vld [vmem:[%s4] sm:$0x1]
        %v351 = vperm.slane %v349, 0
        %vm353 = vcmask 64512
        %v355 = vsel %vm353, %v347, 0
        %357 = vmatpush.msra.mxu0 0.0
        %358 = vmatpush.msra.mxu0 0.0
        %359 = vmatpush.msra.mxu0 0.0
        %360 = vmatpush.msra.mxu0 0.0
        %361 = vmatpush.msra.mxu0 0.0
        %362 = vmatpush.msra.mxu0 0.0
        %363 = vmatpush.msra.mxu0 0.0
        %364 = vmatpush.msra.mxu0 0.0
        %365 = vmatpush.msra.mxu0 0.0
        %366 = vmatpush.msra.mxu0 0.0
        %367 = vmatpush.msra.mxu0 0.0
        %368 = vmatpush.msra.mxu0 0.0
        %369 = vmatpush.msra.mxu0 0.0
        %370 = vmatpush.msra.mxu0 0.0
        %371 = vmatpush.msra.mxu0 0.0
        %372 = vmatpush.msra.mxu0 %v348
        %373 = vmatmul.f32.gmra.mxu0 %v355
        %v374 = vpop.f32.mrf.mxu0
        %v375 = vadd.f32 %v351, %v374
        %376 = vdwg.mxu0
        %v378 = vrot.slane %v375, 1
        %v380 = vadd.f32 %v375, %v378
        %v381 = vxor.u32 %v380, 2147483648
        %v382 = vmul.f32 %v381, 1.442695
        %v383 = vpow.pop %v382
        %v384 = vadd.f32 %v383, 1.0
        %v385 = vrcp.pop %v384
        %v386 = vmul.f32 %v384, %v385
        %v387 = vsub.f32 1.0, %v386
        %v388 = vmul.f32 %v385, %v387
        %v389 = vadd.f32 %v385, %v388
        %vm390 = vweird.f32 %v384
        %vm391 = vweird.f32 %v385
        %vm392 = vmor %vm390, %vm391
        %v393 = vsel %vm392, %v385, %v389
        %v394 = vand.u32 2147483647, %v384
        %vm395 = vcmp.eq.f32.partialorder %v394, 8.507059e+37
        %v396 = vand.u32 %v384, 2147483648
        %v397 = vor.u32 1.1754944e-38, %v396
        %v398 = vsel %vm395, %v397, %v393
        %v399 = vmul.f32 1.0, %v398
        %v400 = vperm.slane %v399, 0
        %v401 = vlaneseq
        %v402 = vshrl.u32 %v401, 7
        %404 = vset.pattern.permute.xlu0 %v402
        %405 = vperm.xlu0 %404, %v400
        %v406 = vpop.permute.xlu0 %405
        %v407 = vlaneseq
        %v408 = vshrl.u32 %v407, 7
        %v409 = vadd.s32 %v408, 8
        %410 = vset.pattern.permute.xlu0 %v409
        %411 = vperm.xlu0 %410, %v400
        %v412 = vpop.permute.xlu0 %411
        %v413 = vlaneseq
        %v414 = vshrl.u32 %v413, 7
        %v415 = vadd.s32 %v414, 16
        %416 = vset.pattern.permute.xlu0 %v415
        %417 = vperm.xlu0 %416, %v400
        %v418 = vpop.permute.xlu0 %417
        %v419 = vlaneseq
        %v420 = vshrl.u32 %v419, 7
        %v421 = vadd.s32 %v420, 24
        %422 = vset.pattern.permute.xlu0 %v421
        %423 = vperm.xlu0 %422, %v400
        %v424 = vpop.permute.xlu0 %423
        %v425 = vmul.f32 %v245, %v406
        %v426 = vmul.f32 %v246, %v406
        %v427 = vmul.f32 %v247, %v412
        %v428 = vmul.f32 %v248, %v412
        %v429 = vmul.f32 %v249, %v418
        %v430 = vmul.f32 %v250, %v418
        %v431 = vmul.f32 %v251, %v424
        %v432 = vmul.f32 %v252, %v424
        %433 = vst [vmem:[%s244] sm:$0xff] %v425
        %434 = vst [vmem:[%s244 + $0x8] sm:$0xff] %v426
        %435 = vst [vmem:[%s244 + $0x10] sm:$0xff] %v427
        %436 = vst [vmem:[%s244 + $0x18] sm:$0xff] %v428
        %437 = vst [vmem:[%s244 + $0x20] sm:$0xff] %v429
        %438 = vst [vmem:[%s244 + $0x28] sm:$0xff] %v430
        %439 = vst [vmem:[%s244 + $0x30] sm:$0xff] %v431
        %440 = vst [vmem:[%s244 + $0x38] sm:$0xff] %v432
        %s441 = sand.u32 %s140, 1
        %s442 = scalar_lea.sflag [#allocation4], %s441
        %s443 = sand.u32 %s140, 1
        %s444 = smul.addr %s443, 64
        %s445 = scalar_lea.vmem [#allocation5], %s444
        // Predicated region
        $region45: #{tpu_custom_call.1} parent=39 // pred_check
          %p446 = pneg %p150
        $region46: #{tpu_custom_call.1} parent=39 // pred_check_branch
          %448 = sbr.rel (%p446) target = $region48
        $region47: #{tpu_custom_call.1} parent=39 // pred_region
          %450 = vsyncadd %s442, 0
          %s451 = smul.addr %s22, 8
          %s452 = smul.addr %s451, 8
          %s453 = scalar_lea.hbm %s5, %s452
          %s454 = sshll.u32 %s445, 4
          %s455 = int_to_ptr.vmem [resolvable:$true] %s454
          %s456 = sshll.u32 %s453, 4
          %s457 = int_to_ptr.hbm [resolvable:$true] %s456
          %462 = dma.vmem_to_hbm [thread:$0]  %s455, 1024, %s457, %s442, 256, 256, 16
        $region48: #{tpu_custom_call.1} parent=39 // pred_fallthru
          _
      $region40: #{tpu_custom_call.1} parent=5 // pred_fallthru
        _
      %p463 = scmp.le.s32.totalorder 2, %s17
      // Predicated region
      $region49: #{tpu_custom_call.1} parent=5 // pred_check
        %p464 = pneg %p463
      $region50: #{tpu_custom_call.1} parent=5 // pred_check_branch
        %466 = sbr.rel (%p464) target = $region52
      $region51: #{tpu_custom_call.1} parent=5 // pred_region
        %s467 = ssub.s32 %s17, 2
        // Predicated region
        $region53: #{tpu_custom_call.1} parent=51 // pred_check
          %p468 = pneg %p156
        $region54: #{tpu_custom_call.1} parent=51 // pred_check_branch
          %470 = sbr.rel (%p468) target = $region56
        $region55: #{tpu_custom_call.1} parent=51 // pred_region
          %s471 = sand.u32 %s141, 1
          %s472 = scalar_lea.sflag [#allocation4], %s471
          %s473 = sand.u32 %s141, 1
          %s474 = smul.addr %s473, 64
          %s475 = scalar_lea.vmem [#allocation5], %s474
          %477 = dma.done %s472, 1024
        $region56: #{tpu_custom_call.1} parent=51 // pred_fallthru
          _
      $region52: #{tpu_custom_call.1} parent=5 // pred_fallthru
        _
    $region6: #{tpu_custom_call.1} parent=1 // loop_footer
      %s21 = sadd.s32 1, %s17
    $region7: #{tpu_custom_call.1} parent=1 // loop_footer_branch
      %16 = sbr.rel target = $region3
    $region8: #{tpu_custom_call.1} parent=1 // loop_exit
      _
    %478 = vsyncpa [#allocation3], 1
    %s479 = scalar_lea.sflag [#allocation3], 1
    %480 = vsyncpa %s479, 1
    %481 = vsyncpa [#allocation4], 1
    %s482 = scalar_lea.sflag [#allocation4], 1
    %483 = vsyncpa %s482, 1

</llo_original>
